<compile_context>
chip_gen: v5e
topology: v5e:2x2
jax: 0.10.0
libtpu: 0.0.40
codegen_flags: <defaults>
</compile_context>

<pallas_src>
import functools

import jax
import jax.numpy as jnp
from jax.experimental import pallas as pl
from jax.experimental.pallas import tpu as pltpu

_SUBLANE = 8
_LANE = 128


def _round_up(x, m):
    return (x + m - 1) // m * m


# -----------------------------------------------------------------------------
# Kernel: one batch tile (BB, T, Hp) per grid step.
# -----------------------------------------------------------------------------
def _attention_kernel(enc_ref, wT_ref, b_ref, v_ref, ctx_ref, attw_ref):
    BB, T, Hp = enc_ref.shape
    enc = enc_ref[...]                                          # (BB, T, Hp) f32

    # Linear + tanh over the lane-dense feature axis: one MXU matmul per tile.
    energy = jnp.tanh(
        jnp.dot(enc.reshape(BB * T, Hp), wT_ref[...],
                preferred_element_type=jnp.float32)
        + b_ref[...])                                           # (BB*T, Hp)

    # scores[b, t] = sum_h v[h] * energy[b, t, h]   (VPU mul + lane reduce).
    scores = jnp.sum(energy.reshape(BB, T, Hp) * v_ref[...][None], axis=-1)

    # Exact, numerically-stable softmax over T (matches torch.softmax).
    m = jnp.max(scores, axis=-1, keepdims=True)
    e = jnp.exp(scores - m)
    w = e / jnp.sum(e, axis=-1, keepdims=True)                  # (BB, T)
    attw_ref[...] = w

    # context[b, :] = sum_t w[b, t] * enc[b, t, :]  (== bmm(w.unsqueeze(1), enc))
    ctx_ref[...] = jnp.sum(w[:, :, None] * enc, axis=1)         # (BB, Hp)


# -----------------------------------------------------------------------------
# Parameters (Linear weight pre-transposed once at init).
# -----------------------------------------------------------------------------
def init_params(key, hidden_dim):
    H = hidden_dim
    k_w, k_b, k_v = jax.random.split(key, 3)
    bound = 1.0 / float(H) ** 0.5
    w = jax.random.uniform(k_w, (H, H), jnp.float32, -bound, bound)   # nn.Linear.weight
    b = jax.random.uniform(k_b, (1, H), jnp.float32, -bound, bound)   # nn.Linear.bias
    v = jax.random.uniform(k_v, (1, H), jnp.float32, 0.0, 1.0)        # torch.rand(H)
    return {"wT": jnp.transpose(w), "b": b, "v": v}                   # wT: (H_in, H_out)


# -----------------------------------------------------------------------------
# Forward pass
# -----------------------------------------------------------------------------
@functools.partial(jax.jit, static_argnames=("batch_tile",))
def attention_forward(params, hidden, encoder_outputs, batch_tile=_SUBLANE):
    del hidden  # Unused by the reference Attention.forward (kept for API parity).
    B, T, H = encoder_outputs.shape
    Hp = _round_up(H, _LANE)
    BB = batch_tile
    Bp = _round_up(B, BB)

    # Zero-pad to lane/sublane-friendly shapes; zeros are inert for tanh/score,
    # padded rows/cols are stripped below.
    enc = jnp.pad(encoder_outputs.astype(jnp.float32),
                  ((0, Bp - B), (0, 0), (0, Hp - H)))
    wT = jnp.pad(params["wT"], ((0, Hp - H), (0, Hp - H)))
    b = jnp.pad(params["b"], ((0, 0), (0, Hp - H)))
    v = jnp.pad(params["v"], ((0, 0), (0, Hp - H)))

    ctx, attw = pl.pallas_call(
        _attention_kernel,
        out_shape=(jax.ShapeDtypeStruct((Bp, Hp), jnp.float32),
                   jax.ShapeDtypeStruct((Bp, T), jnp.float32)),
        grid=(Bp // BB,),
        in_specs=[
            pl.BlockSpec((BB, T, Hp), lambda i: (i, 0, 0)),   # encoder_outputs tile
            pl.BlockSpec((Hp, Hp), lambda i: (0, 0)),          # W^T (resident)
            pl.BlockSpec((1, Hp), lambda i: (0, 0)),           # bias
            pl.BlockSpec((1, Hp), lambda i: (0, 0)),           # v
        ],
        out_specs=(
            pl.BlockSpec((BB, Hp), lambda i: (i, 0)),          # context
            pl.BlockSpec((BB, T), lambda i: (i, 0)),           # attention weights
        ),
        compiler_params=pltpu.CompilerParams(
            dimension_semantics=("parallel",),
            vmem_limit_bytes=32 * 1024 * 1024,
        ),
    )(enc, wT, b, v)

    # Strip batch / hidden padding in XLA glue.
    return ctx[:B, :H], attw[:B]


# -----------------------------------------------------------------------------
# Pure-JAX reference (mirrors the torch module) for a correctness check.
# -----------------------------------------------------------------------------
def attention_reference(params, encoder_outputs):
    energy = jnp.tanh(encoder_outputs @ params["wT"] + params["b"][0])
    scores = jnp.sum(params["v"][0] * energy, axis=-1)
    w = jax.nn.softmax(scores, axis=-1)
    ctx = jnp.einsum("bt,bth->bh", w, encoder_outputs)
    return ctx, w


# -----------------------------------------------------------------------------
if __name__ == "__main__":
    HIDDEN = 128
    B, T = 2, 8

    key = jax.random.PRNGKey(0)
    k_p, k_h, k_e = jax.random.split(key, 3)
    params = init_params(k_p, HIDDEN)
    hidden_state = jax.random.normal(k_h, (B, HIDDEN), dtype=jnp.float32)
    encoder_outputs = jax.random.normal(k_e, (B, T, HIDDEN), dtype=jnp.float32)

    context, attn_w = attention_forward(params, hidden_state, encoder_outputs)
    jax.block_until_ready((context, attn_w))

    assert context.shape == (B, HIDDEN), context.shape
    assert attn_w.shape == (B, T), attn_w.shape
    assert bool(jnp.all(jnp.isfinite(context)))
    assert bool(jnp.all(jnp.isfinite(attn_w)))
    # Exact softmax: rows must sum to 1.
    assert bool(jnp.allclose(jnp.sum(attn_w, axis=-1), 1.0, atol=1e-4))

    ref_ctx, ref_w = attention_reference(params, encoder_outputs)
    assert bool(jnp.allclose(attn_w, ref_w, atol=1e-2, rtol=1e-2))
    assert bool(jnp.allclose(context, ref_ctx, atol=1e-2, rtol=1e-2))

    print("KERNEL_OK")
</pallas_src>

<mosaic_0001>
module attributes {stable_mosaic.version = 11 : i64} {
  func.func @_attention_kernel(%arg0: i32, %arg1: memref<8x8x128xf32, #tpu.memory_space<vmem>>, %arg2: memref<128x128xf32, #tpu.memory_space<vmem>>, %arg3: memref<1x128xf32, #tpu.memory_space<vmem>>, %arg4: memref<1x128xf32, #tpu.memory_space<vmem>>, %arg5: memref<8x128xf32, #tpu.memory_space<vmem>>, %arg6: memref<8x8xf32, #tpu.memory_space<vmem>>) attributes {dimension_semantics = [#tpu.dimension_semantics<parallel>], iteration_bounds = array<i64: 1>, scalar_prefetch = 0 : i64, scratch_operands = 0 : i64, tpu.core_type = #tpu.core_type<tc>, window_params = [{transform_indices = @transform_0, window_bounds = array<i64: 8, 8, 128>}, {pipeline_mode = #tpu.pipeline_mode<synchronous>, transform_indices = @transform_1, window_bounds = array<i64: 128, 128>}, {pipeline_mode = #tpu.pipeline_mode<synchronous>, transform_indices = @transform_2, window_bounds = array<i64: 1, 128>}, {pipeline_mode = #tpu.pipeline_mode<synchronous>, transform_indices = @transform_3, window_bounds = array<i64: 1, 128>}, {transform_indices = @transform_4, window_bounds = array<i64: 8, 128>}, {transform_indices = @transform_5, window_bounds = array<i64: 8, 8>}]} {
    %c0 = arith.constant 0 : index
    %c0_0 = arith.constant 0 : index
    %c0_1 = arith.constant 0 : index
    %0 = vector.load %arg1[%c0, %c0_0, %c0_1] : memref<8x8x128xf32, #tpu.memory_space<vmem>>, vector<8x8x128xf32>
    %1 = vector.shape_cast %0 : vector<8x8x128xf32> to vector<64x128xf32>
    %c0_2 = arith.constant 0 : index
    %c0_3 = arith.constant 0 : index
    %2 = vector.load %arg2[%c0_2, %c0_3] : memref<128x128xf32, #tpu.memory_space<vmem>>, vector<128x128xf32>
    %cst = arith.constant dense<0.000000e+00> : vector<64x128xf32>
    %3 = tpu.matmul %1, %2, %cst {dimension_numbers = #tpu.dot_dimension_numbers<[1], [0], [0], [1], [0, 0, 1, 1], [], []>} : vector<64x128xf32>, vector<128x128xf32>, vector<64x128xf32> -> vector<64x128xf32>
    %c0_4 = arith.constant 0 : index
    %c0_5 = arith.constant 0 : index
    %4 = vector.load %arg3[%c0_4, %c0_5] : memref<1x128xf32, #tpu.memory_space<vmem>>, vector<1x128xf32>
    %5 = vector.broadcast %4 : vector<1x128xf32> to vector<64x128xf32>
    %6 = arith.addf %3, %5 : vector<64x128xf32>
    %7 = math.tanh %6 : vector<64x128xf32>
    %8 = vector.shape_cast %7 : vector<64x128xf32> to vector<8x8x128xf32>
    %c0_6 = arith.constant 0 : index
    %c0_7 = arith.constant 0 : index
    %9 = vector.load %arg4[%c0_6, %c0_7] : memref<1x128xf32, #tpu.memory_space<vmem>>, vector<1x128xf32>
    %10 = vector.shape_cast %9 : vector<1x128xf32> to vector<1x1x128xf32>
    %11 = vector.broadcast %10 : vector<1x1x128xf32> to vector<8x8x128xf32>
    %12 = arith.mulf %8, %11 : vector<8x8x128xf32>
    %cst_8 = arith.constant dense<0.000000e+00> : vector<8x8xf32>
    %13 = vector.multi_reduction <add>, %12, %cst_8 [2] : vector<8x8x128xf32> to vector<8x8xf32>
    %cst_9 = arith.constant dense<0xFF800000> : vector<8xf32>
    %14 = vector.multi_reduction <maximumf>, %13, %cst_9 [1] : vector<8x8xf32> to vector<8xf32>
    %15 = vector.shape_cast %14 : vector<8xf32> to vector<8x1xf32>
    %16 = vector.broadcast %15 : vector<8x1xf32> to vector<8x8xf32>
    %17 = arith.subf %13, %16 : vector<8x8xf32>
    %18 = math.exp %17 : vector<8x8xf32>
    %cst_10 = arith.constant dense<0.000000e+00> : vector<8xf32>
    %19 = vector.multi_reduction <add>, %18, %cst_10 [1] : vector<8x8xf32> to vector<8xf32>
    %20 = vector.shape_cast %19 : vector<8xf32> to vector<8x1xf32>
    %21 = vector.broadcast %20 : vector<8x1xf32> to vector<8x8xf32>
    %22 = arith.divf %18, %21 : vector<8x8xf32>
    %c0_11 = arith.constant 0 : index
    %c0_12 = arith.constant 0 : index
    %23 = vector.load %arg6[%c0_11, %c0_12] : memref<8x8xf32, #tpu.memory_space<vmem>>, vector<8x8xf32>
    tpu.vector_store %arg6[%c0_11, %c0_12], %22 {strides = array<i32>} : memref<8x8xf32, #tpu.memory_space<vmem>>, vector<8x8xf32>,
    %24 = vector.shape_cast %22 : vector<8x8xf32> to vector<8x8x1xf32>
    %25 = vector.broadcast %24 : vector<8x8x1xf32> to vector<8x8x128xf32>
    %26 = arith.mulf %25, %0 : vector<8x8x128xf32>
    %cst_13 = arith.constant dense<0.000000e+00> : vector<8x128xf32>
    %27 = vector.multi_reduction <add>, %26, %cst_13 [1] : vector<8x8x128xf32> to vector<8x128xf32>
    %c0_14 = arith.constant 0 : index
    %c0_15 = arith.constant 0 : index
    %28 = vector.load %arg5[%c0_14, %c0_15] : memref<8x128xf32, #tpu.memory_space<vmem>>, vector<8x128xf32>
    tpu.vector_store %arg5[%c0_14, %c0_15], %27 {strides = array<i32>} : memref<8x128xf32, #tpu.memory_space<vmem>>, vector<8x128xf32>,
    return
  }
  func.func @transform_0(%arg0: i32) -> (i32, i32, i32) {
    %c0_i32 = arith.constant 0 : i32
    %c0_i32_0 = arith.constant 0 : i32
    %c0_i32_1 = arith.constant 0 : i32
    return %arg0, %c0_i32, %c0_i32_0 : i32, i32, i32
  }
  func.func @transform_1(%arg0: i32) -> (i32, i32) {
    %c0_i32 = arith.constant 0 : i32
    %c0_i32_0 = arith.constant 0 : i32
    %c0_i32_1 = arith.constant 0 : i32
    return %c0_i32, %c0_i32_0 : i32, i32
  }
  func.func @transform_2(%arg0: i32) -> (i32, i32) {
    %c0_i32 = arith.constant 0 : i32
    %c0_i32_0 = arith.constant 0 : i32
    %c0_i32_1 = arith.constant 0 : i32
    return %c0_i32, %c0_i32_0 : i32, i32
  }
  func.func @transform_3(%arg0: i32) -> (i32, i32) {
    %c0_i32 = arith.constant 0 : i32
    %c0_i32_0 = arith.constant 0 : i32
    %c0_i32_1 = arith.constant 0 : i32
    return %c0_i32, %c0_i32_0 : i32, i32
  }
  func.func @transform_4(%arg0: i32) -> (i32, i32) {
    %c0_i32 = arith.constant 0 : i32
    %c0_i32_0 = arith.constant 0 : i32
    return %arg0, %c0_i32 : i32, i32
  }
  func.func @transform_5(%arg0: i32) -> (i32, i32) {
    %c0_i32 = arith.constant 0 : i32
    %c0_i32_0 = arith.constant 0 : i32
    return %arg0, %c0_i32 : i32, i32
  }
}

</mosaic_0001>

<llo_original>
// kernel: attention_forward.1
$region0: #{attention_forward.1}
  #allocation0 [shape = 'u32[]', space=smem, size = 0x4, offset = 0x4, fixed_abs, tag = 'smem constant byte address 0x4 - core index']
  #allocation1 [shape = 'u32[72,128]{1,0:T(1,128)}', space=vmem, size = 0x9000, scoped, tag = 'internal scratch']
  %s0 = inlined_call_operand.vmem [shape: f32[8,8,128], index: 0, kind: input, shape index: {}]
  %s1 = inlined_call_operand.hbm [shape: f32[128,128], index: 1, kind: input, shape index: {}]
  %s2 = inlined_call_operand.vmem [shape: f32[1,128], index: 2, kind: input, shape index: {}]
  %s3 = inlined_call_operand.vmem [shape: f32[1,128], index: 3, kind: input, shape index: {}]
  %s4 = inlined_call_operand.vmem [shape: f32[8,128], index: 4, kind: output, shape index: {0}]
  %s5 = inlined_call_operand.vmem [shape: f32[8,8], index: 5, kind: output, shape index: {1}]
  %6 = xla_tuple %s4, %s5
  %s7 = sld [smem:[#allocation0]]
  $region38: #{attention_forward.1} parent=0
    _
  %s9 = ssub.s32 1, %s7
  %s10 = scalar_select 0, %s9, %s7
  $region1: #{attention_forward.1} parent=0
    #allocation2 [shape = 'u8[65536]{0}', space=vmem, size = 0x10000, scoped, tag = 'input window, operand 1, single buffered']
    #allocation3 [shape = 's32[1]{0}', space=sflag, size = 0x4, scoped, tag = 'scoped memory for attention_forward.1']
    %11 = vsyncpa [#allocation3], 0
    // Predicated region
    $region2: #{attention_forward.1} parent=1 // pred_check
      _
    $region3: #{attention_forward.1} parent=1 // pred_check_branch
      %13 = sbr.rel (0) target = $region5
    $region4: #{attention_forward.1} parent=1 // pred_region
      _
    $region5: #{attention_forward.1} parent=1 // pred_fallthru
      _
    // Predicated region
    $region6: #{attention_forward.1} parent=1 // pred_check
      _
    $region7: #{attention_forward.1} parent=1 // pred_check_branch
      %15 = sbr.rel (0) target = $region9
    $region8: #{attention_forward.1} parent=1 // pred_region
      %17 = vsyncadd [#allocation3], 0
      %s18 = sshll.u32 %s1, 4
      %s19 = int_to_ptr.hbm [resolvable:$true] %s18
      %s20 = sshll.u32 [#allocation2], 4
      %s21 = int_to_ptr.vmem [resolvable:$true] %s20
      %26 = dma.hbm_to_vmem [thread:$0]  %s19, 2048, %s21, [#allocation3], 128, 128, 8
    $region9: #{attention_forward.1} parent=1 // pred_fallthru
      _
    // Predicated region
    $region10: #{attention_forward.1} parent=1 // pred_check
      _
    $region11: #{attention_forward.1} parent=1 // pred_check_branch
      %28 = sbr.rel (0) target = $region13
    $region12: #{attention_forward.1} parent=1 // pred_region
      _
    $region13: #{attention_forward.1} parent=1 // pred_fallthru
      _
    // Predicated region
    $region14: #{attention_forward.1} parent=1 // pred_check
      _
    $region15: #{attention_forward.1} parent=1 // pred_check_branch
      %30 = sbr.rel (0) target = $region17
    $region16: #{attention_forward.1} parent=1 // pred_region
      _
    $region17: #{attention_forward.1} parent=1 // pred_fallthru
      _
    // Predicated region
    $region18: #{attention_forward.1} parent=1 // pred_check
      _
    $region19: #{attention_forward.1} parent=1 // pred_check_branch
      %32 = sbr.rel (0) target = $region21
    $region20: #{attention_forward.1} parent=1 // pred_region
      %34 = dma.done [#allocation3], 2048
    $region21: #{attention_forward.1} parent=1 // pred_fallthru
      _
    %v35 = vld [vmem:[%s0] sm:$0xff]
    %v36 = vld [vmem:[%s0 + $0x8] sm:$0xff]
    %v37 = vld [vmem:[%s0 + $0x10] sm:$0xff]
    %v38 = vld [vmem:[%s0 + $0x18] sm:$0xff]
    %v39 = vld [vmem:[%s0 + $0x20] sm:$0xff]
    %v40 = vld [vmem:[%s0 + $0x28] sm:$0xff]
    %v41 = vld [vmem:[%s0 + $0x30] sm:$0xff]
    %v42 = vld [vmem:[%s0 + $0x38] sm:$0xff]
    %v43 = vld [vmem:[#allocation2] sm:$0xff]
    %v44 = vld [vmem:[#allocation2 + $0x8] sm:$0xff]
    %v45 = vld [vmem:[#allocation2 + $0x10] sm:$0xff]
    %v46 = vld [vmem:[#allocation2 + $0x18] sm:$0xff]
    %v47 = vld [vmem:[#allocation2 + $0x20] sm:$0xff]
    %v48 = vld [vmem:[#allocation2 + $0x28] sm:$0xff]
    %v49 = vld [vmem:[#allocation2 + $0x30] sm:$0xff]
    %v50 = vld [vmem:[#allocation2 + $0x38] sm:$0xff]
    %v51 = vld [vmem:[#allocation2 + $0x40] sm:$0xff]
    %v52 = vld [vmem:[#allocation2 + $0x48] sm:$0xff]
    %v53 = vld [vmem:[#allocation2 + $0x50] sm:$0xff]
    %v54 = vld [vmem:[#allocation2 + $0x58] sm:$0xff]
    %v55 = vld [vmem:[#allocation2 + $0x60] sm:$0xff]
    %v56 = vld [vmem:[#allocation2 + $0x68] sm:$0xff]
    %v57 = vld [vmem:[#allocation2 + $0x70] sm:$0xff]
    %v58 = vld [vmem:[#allocation2 + $0x78] sm:$0xff]
    %v59 = vld [vmem:[%s2] sm:$0x1]
    %v61 = vperm.slane %v59, 0
    %63 = vmatpush.msra.mxu0 %v58
    %64 = vmatpush.msra.mxu0 %v57
    %65 = vmatpush.msra.mxu0 %v56
    %66 = vmatpush.msra.mxu0 %v55
    %67 = vmatpush.msra.mxu0 %v54
    %68 = vmatpush.msra.mxu0 %v53
    %69 = vmatpush.msra.mxu0 %v52
    %70 = vmatpush.msra.mxu0 %v51
    %71 = vmatpush.msra.mxu0 %v50
    %72 = vmatpush.msra.mxu0 %v49
    %73 = vmatpush.msra.mxu0 %v48
    %74 = vmatpush.msra.mxu0 %v47
    %75 = vmatpush.msra.mxu0 %v46
    %76 = vmatpush.msra.mxu0 %v45
    %77 = vmatpush.msra.mxu0 %v44
    %78 = vmatpush.msra.mxu0 %v43
    %79 = vmatmul.f32.gmra.mxu0 %v35
    %v80 = vpop.f32.mrf.mxu0
    %v81 = vadd.f32 %v61, %v80
    %82 = vmatmul.f32.gmra.mxu0 %v36
    %v83 = vpop.f32.mrf.mxu0
    %v84 = vadd.f32 %v61, %v83
    %85 = vmatmul.f32.gmra.mxu0 %v37
    %v86 = vpop.f32.mrf.mxu0
    %v87 = vadd.f32 %v61, %v86
    %88 = vmatmul.f32.gmra.mxu0 %v38
    %v89 = vpop.f32.mrf.mxu0
    %v90 = vadd.f32 %v61, %v89
    %91 = vmatmul.f32.gmra.mxu0 %v39
    %v92 = vpop.f32.mrf.mxu0
    %v93 = vadd.f32 %v61, %v92
    %94 = vmatmul.f32.gmra.mxu0 %v40
    %v95 = vpop.f32.mrf.mxu0
    %v96 = vadd.f32 %v61, %v95
    %97 = vmatmul.f32.gmra.mxu0 %v41
    %v98 = vpop.f32.mrf.mxu0
    %v99 = vadd.f32 %v61, %v98
    %100 = vmatmul.f32.gmra.mxu0 %v42
    %v101 = vpop.f32.mrf.mxu0
    %v102 = vadd.f32 %v61, %v101
    %103 = vdwg.mxu0
    %v104 = vtanh.pop %v81
    %v105 = vtanh.pop %v84
    %v106 = vtanh.pop %v87
    %v107 = vtanh.pop %v90
    %v108 = vtanh.pop %v93
    %v109 = vtanh.pop %v96
    %v110 = vtanh.pop %v99
    %v111 = vtanh.pop %v102
    %v112 = vld [vmem:[%s3] sm:$0x1]
    %v114 = vperm.slane %v112, 0
    %v116 = vmul.f32 %v104, %v114
    %v117 = vmul.f32 %v105, %v114
    %v118 = vmul.f32 %v106, %v114
    %v119 = vmul.f32 %v107, %v114
    %v120 = vmul.f32 %v108, %v114
    %v121 = vmul.f32 %v109, %v114
    %v122 = vmul.f32 %v110, %v114
    %v123 = vmul.f32 %v111, %v114
    %124 = vadd.xlane.f32.xlu0 %v116
    %v125 = vpop.xlane.xlu0 %124
    %126 = vadd.xlane.f32.xlu0 %v117
    %v127 = vpop.xlane.xlu0 %126
    %128 = vadd.xlane.f32.xlu0 %v118
    %v129 = vpop.xlane.xlu0 %128
    %130 = vadd.xlane.f32.xlu0 %v119
    %v131 = vpop.xlane.xlu0 %130
    %132 = vadd.xlane.f32.xlu0 %v120
    %v133 = vpop.xlane.xlu0 %132
    %134 = vadd.xlane.f32.xlu0 %v121
    %v135 = vpop.xlane.xlu0 %134
    %136 = vadd.xlane.f32.xlu0 %v122
    %v137 = vpop.xlane.xlu0 %136
    %138 = vadd.xlane.f32.xlu0 %v123
    %v139 = vpop.xlane.xlu0 %138
    %v148 = vlaneseq
    %v149 = vand.u32 %v148, 127
    %v150 = vperm.slane %v125, %v149
    %v151 = vperm.slane %v127, %v149
    %v152 = vperm.slane %v129, %v149
    %v153 = vperm.slane %v131, %v149
    %v154 = vperm.slane %v133, %v149
    %v155 = vperm.slane %v135, %v149
    %v156 = vperm.slane %v137, %v149
    %v157 = vperm.slane %v139, %v149
    %vm158 = vcmask 1041409
    %v159 = vsel %vm158, %v151, %v150
    %vm160 = vcmask 1042434
    %v161 = vsel %vm160, %v152, %v159
    %vm162 = vcmask 1043459
    %v163 = vsel %vm162, %v153, %v161
    %vm164 = vcmask 1044484
    %v165 = vsel %vm164, %v154, %v163
    %vm166 = vcmask 1045509
    %v167 = vsel %vm166, %v155, %v165
    %vm168 = vcmask 1046534
    %v169 = vsel %vm168, %v156, %v167
    %vm170 = vcmask 1047559
    %v171 = vsel %vm170, %v157, %v169
    %vm173 = vcmask 64512
    %v174 = vsel %vm173, %v171, -inf
    %175 = vmax.xlane.f32.xlu0 %v174
    %v176 = vpop.xlane.xlu0 %175
    %v178 = vperm.slane %v176, 0
    %v179 = vperm.slane %v176, 1
    %v180 = vperm.slane %v176, 2
    %v181 = vperm.slane %v176, 3
    %v182 = vperm.slane %v176, 4
    %v183 = vperm.slane %v176, 5
    %v184 = vperm.slane %v176, 6
    %v185 = vperm.slane %v176, 7
    %v194 = vsub.f32 %v125, %v178
    %v195 = vsub.f32 %v127, %v179
    %v196 = vsub.f32 %v129, %v180
    %v197 = vsub.f32 %v131, %v181
    %v198 = vsub.f32 %v133, %v182
    %v199 = vsub.f32 %v135, %v183
    %v200 = vsub.f32 %v137, %v184
    %v201 = vsub.f32 %v139, %v185
    %v202 = vmul.f32 %v194, 1.442695
    %v203 = vpow.pop %v202
    %v204 = vmul.f32 %v195, 1.442695
    %v205 = vpow.pop %v204
    %v206 = vmul.f32 %v196, 1.442695
    %v207 = vpow.pop %v206
    %v208 = vmul.f32 %v197, 1.442695
    %v209 = vpow.pop %v208
    %v210 = vmul.f32 %v198, 1.442695
    %v211 = vpow.pop %v210
    %v212 = vmul.f32 %v199, 1.442695
    %v213 = vpow.pop %v212
    %v214 = vmul.f32 %v200, 1.442695
    %v215 = vpow.pop %v214
    %v216 = vmul.f32 %v201, 1.442695
    %v217 = vpow.pop %v216
    %226 = vset.pattern.permute.xlu0 0
    %227 = vperm.xlu0 %226, %v203
    %v228 = vpop.permute.xlu0 %227
    %229 = vset.pattern.permute.xlu0 0
    %230 = vperm.xlu0 %229, %v205
    %v231 = vpop.permute.xlu0 %230
    %232 = vset.pattern.permute.xlu0 0
    %233 = vperm.xlu0 %232, %v207
    %v234 = vpop.permute.xlu0 %233
    %235 = vset.pattern.permute.xlu0 0
    %236 = vperm.xlu0 %235, %v209
    %v237 = vpop.permute.xlu0 %236
    %238 = vset.pattern.permute.xlu0 0
    %239 = vperm.xlu0 %238, %v211
    %v240 = vpop.permute.xlu0 %239
    %241 = vset.pattern.permute.xlu0 0
    %242 = vperm.xlu0 %241, %v213
    %v243 = vpop.permute.xlu0 %242
    %244 = vset.pattern.permute.xlu0 0
    %245 = vperm.xlu0 %244, %v215
    %v246 = vpop.permute.xlu0 %245
    %247 = vset.pattern.permute.xlu0 0
    %248 = vperm.xlu0 %247, %v217
    %v249 = vpop.permute.xlu0 %248
    %v250 = vperm.slane %v228, %v149
    %v251 = vperm.slane %v231, %v149
    %v252 = vperm.slane %v234, %v149
    %v253 = vperm.slane %v237, %v149
    %v254 = vperm.slane %v240, %v149
    %v255 = vperm.slane %v243, %v149
    %v256 = vperm.slane %v246, %v149
    %v257 = vperm.slane %v249, %v149
    %v258 = vsel %vm158, %v251, %v250
    %v259 = vsel %vm160, %v252, %v258
    %v260 = vsel %vm162, %v253, %v259
    %v261 = vsel %vm164, %v254, %v260
    %v262 = vsel %vm166, %v255, %v261
    %v263 = vsel %vm168, %v256, %v262
    %v264 = vsel %vm170, %v257, %v263
    %v266 = vsel %vm173, %v264, 0.0
    %267 = vadd.xlane.f32.xlu0 %v266
    %v268 = vpop.xlane.xlu0 %267
    %v270 = vperm.slane %v268, 0
    %v271 = vperm.slane %v268, 1
    %v272 = vperm.slane %v268, 2
    %v273 = vperm.slane %v268, 3
    %v274 = vperm.slane %v268, 4
    %v275 = vperm.slane %v268, 5
    %v276 = vperm.slane %v268, 6
    %v277 = vperm.slane %v268, 7
    %v286 = vrcp.pop %v270
    %v287 = vmul.f32 %v270, %v286
    %v288 = vsub.f32 1.0, %v287
    %v289 = vmul.f32 %v286, %v288
    %v290 = vadd.f32 %v286, %v289
    %vm291 = vweird.f32 %v270
    %vm292 = vweird.f32 %v286
    %vm293 = vmor %vm291, %vm292
    %v294 = vsel %vm293, %v286, %v290
    %v295 = vand.u32 2147483647, %v270
    %vm296 = vcmp.eq.f32.partialorder %v295, 8.507059e+37
    %v297 = vand.u32 %v270, 2147483648
    %v298 = vor.u32 1.1754944e-38, %v297
    %v299 = vsel %vm296, %v298, %v294
    %v300 = vmul.f32 %v203, %v299
    %v301 = vrcp.pop %v271
    %v302 = vmul.f32 %v271, %v301
    %v303 = vsub.f32 1.0, %v302
    %v304 = vmul.f32 %v301, %v303
    %v305 = vadd.f32 %v301, %v304
    %vm306 = vweird.f32 %v271
    %vm307 = vweird.f32 %v301
    %vm308 = vmor %vm306, %vm307
    %v309 = vsel %vm308, %v301, %v305
    %v310 = vand.u32 2147483647, %v271
    %vm311 = vcmp.eq.f32.partialorder %v310, 8.507059e+37
    %v312 = vand.u32 %v271, 2147483648
    %v313 = vor.u32 1.1754944e-38, %v312
    %v314 = vsel %vm311, %v313, %v309
    %v315 = vmul.f32 %v205, %v314
    %v316 = vrcp.pop %v272
    %v317 = vmul.f32 %v272, %v316
    %v318 = vsub.f32 1.0, %v317
    %v319 = vmul.f32 %v316, %v318
    %v320 = vadd.f32 %v316, %v319
    %vm321 = vweird.f32 %v272
    %vm322 = vweird.f32 %v316
    %vm323 = vmor %vm321, %vm322
    %v324 = vsel %vm323, %v316, %v320
    %v325 = vand.u32 2147483647, %v272
    %vm326 = vcmp.eq.f32.partialorder %v325, 8.507059e+37
    %v327 = vand.u32 %v272, 2147483648
    %v328 = vor.u32 1.1754944e-38, %v327
    %v329 = vsel %vm326, %v328, %v324
    %v330 = vmul.f32 %v207, %v329
    %v331 = vrcp.pop %v273
    %v332 = vmul.f32 %v273, %v331
    %v333 = vsub.f32 1.0, %v332
    %v334 = vmul.f32 %v331, %v333
    %v335 = vadd.f32 %v331, %v334
    %vm336 = vweird.f32 %v273
    %vm337 = vweird.f32 %v331
    %vm338 = vmor %vm336, %vm337
    %v339 = vsel %vm338, %v331, %v335
    %v340 = vand.u32 2147483647, %v273
    %vm341 = vcmp.eq.f32.partialorder %v340, 8.507059e+37
    %v342 = vand.u32 %v273, 2147483648
    %v343 = vor.u32 1.1754944e-38, %v342
    %v344 = vsel %vm341, %v343, %v339
    %v345 = vmul.f32 %v209, %v344
    %v346 = vrcp.pop %v274
    %v347 = vmul.f32 %v274, %v346
    %v348 = vsub.f32 1.0, %v347
    %v349 = vmul.f32 %v346, %v348
    %v350 = vadd.f32 %v346, %v349
    %vm351 = vweird.f32 %v274
    %vm352 = vweird.f32 %v346
    %vm353 = vmor %vm351, %vm352
    %v354 = vsel %vm353, %v346, %v350
    %v355 = vand.u32 2147483647, %v274
    %vm356 = vcmp.eq.f32.partialorder %v355, 8.507059e+37
    %v357 = vand.u32 %v274, 2147483648
    %v358 = vor.u32 1.1754944e-38, %v357
    %v359 = vsel %vm356, %v358, %v354
    %v360 = vmul.f32 %v211, %v359
    %v361 = vrcp.pop %v275
    %v362 = vmul.f32 %v275, %v361
    %v363 = vsub.f32 1.0, %v362
    %v364 = vmul.f32 %v361, %v363
    %v365 = vadd.f32 %v361, %v364
    %vm366 = vweird.f32 %v275
    %vm367 = vweird.f32 %v361
    %vm368 = vmor %vm366, %vm367
    %v369 = vsel %vm368, %v361, %v365
    %v370 = vand.u32 2147483647, %v275
    %vm371 = vcmp.eq.f32.partialorder %v370, 8.507059e+37
    %v372 = vand.u32 %v275, 2147483648
    %v373 = vor.u32 1.1754944e-38, %v372
    %v374 = vsel %vm371, %v373, %v369
    %v375 = vmul.f32 %v213, %v374
    %v376 = vrcp.pop %v276
    %v377 = vmul.f32 %v276, %v376
    %v378 = vsub.f32 1.0, %v377
    %v379 = vmul.f32 %v376, %v378
    %v380 = vadd.f32 %v376, %v379
    %vm381 = vweird.f32 %v276
    %vm382 = vweird.f32 %v376
    %vm383 = vmor %vm381, %vm382
    %v384 = vsel %vm383, %v376, %v380
    %v385 = vand.u32 2147483647, %v276
    %vm386 = vcmp.eq.f32.partialorder %v385, 8.507059e+37
    %v387 = vand.u32 %v276, 2147483648
    %v388 = vor.u32 1.1754944e-38, %v387
    %v389 = vsel %vm386, %v388, %v384
    %v390 = vmul.f32 %v215, %v389
    %v391 = vrcp.pop %v277
    %v392 = vmul.f32 %v277, %v391
    %v393 = vsub.f32 1.0, %v392
    %v394 = vmul.f32 %v391, %v393
    %v395 = vadd.f32 %v391, %v394
    %vm396 = vweird.f32 %v277
    %vm397 = vweird.f32 %v391
    %vm398 = vmor %vm396, %vm397
    %v399 = vsel %vm398, %v391, %v395
    %v400 = vand.u32 2147483647, %v277
    %vm401 = vcmp.eq.f32.partialorder %v400, 8.507059e+37
    %v402 = vand.u32 %v277, 2147483648
    %v403 = vor.u32 1.1754944e-38, %v402
    %v404 = vsel %vm401, %v403, %v399
    %v405 = vmul.f32 %v217, %v404
    %414 = vset.pattern.permute.xlu0 0
    %415 = vperm.xlu0 %414, %v300
    %v416 = vpop.permute.xlu0 %415
    %417 = vset.pattern.permute.xlu0 0
    %418 = vperm.xlu0 %417, %v315
    %v419 = vpop.permute.xlu0 %418
    %420 = vset.pattern.permute.xlu0 0
    %421 = vperm.xlu0 %420, %v330
    %v422 = vpop.permute.xlu0 %421
    %423 = vset.pattern.permute.xlu0 0
    %424 = vperm.xlu0 %423, %v345
    %v425 = vpop.permute.xlu0 %424
    %426 = vset.pattern.permute.xlu0 0
    %427 = vperm.xlu0 %426, %v360
    %v428 = vpop.permute.xlu0 %427
    %429 = vset.pattern.permute.xlu0 0
    %430 = vperm.xlu0 %429, %v375
    %v431 = vpop.permute.xlu0 %430
    %432 = vset.pattern.permute.xlu0 0
    %433 = vperm.xlu0 %432, %v390
    %v434 = vpop.permute.xlu0 %433
    %435 = vset.pattern.permute.xlu0 0
    %436 = vperm.xlu0 %435, %v405
    %v437 = vpop.permute.xlu0 %436
    %v438 = vperm.slane %v416, %v149
    %v439 = vperm.slane %v419, %v149
    %v440 = vperm.slane %v422, %v149
    %v441 = vperm.slane %v425, %v149
    %v442 = vperm.slane %v428, %v149
    %v443 = vperm.slane %v431, %v149
    %v444 = vperm.slane %v434, %v149
    %v445 = vperm.slane %v437, %v149
    %v446 = vsel %vm158, %v439, %v438
    %v447 = vsel %vm160, %v440, %v446
    %v448 = vsel %vm162, %v441, %v447
    %v449 = vsel %vm164, %v442, %v448
    %v450 = vsel %vm166, %v443, %v449
    %v451 = vsel %vm168, %v444, %v450
    %v452 = vsel %vm170, %v445, %v451
    %454 = vst.msk [vmem:[%s5] sm:$0xff] %vm173, %v452
    %v463 = vmul.f32 %v416, %v35
    %v464 = vmul.f32 %v419, %v36
    %v465 = vmul.f32 %v422, %v37
    %v466 = vmul.f32 %v425, %v38
    %v467 = vmul.f32 %v428, %v39
    %v468 = vmul.f32 %v431, %v40
    %v469 = vmul.f32 %v434, %v41
    %v470 = vmul.f32 %v437, %v42
    %v471 = vrot.slane %v463, 4
    %v472 = vadd.f32 %v463, %v471
    %v473 = vrot.slane %v472, 2
    %v474 = vadd.f32 %v472, %v473
    %v475 = vrot.slane %v474, 1
    %v476 = vadd.f32 %v474, %v475
    %v477 = vrot.slane %v464, 4
    %v478 = vadd.f32 %v464, %v477
    %v479 = vrot.slane %v478, 2
    %v480 = vadd.f32 %v478, %v479
    %v481 = vrot.slane %v480, 1
    %v482 = vadd.f32 %v480, %v481
    %v483 = vrot.slane %v465, 4
    %v484 = vadd.f32 %v465, %v483
    %v485 = vrot.slane %v484, 2
    %v486 = vadd.f32 %v484, %v485
    %v487 = vrot.slane %v486, 1
    %v488 = vadd.f32 %v486, %v487
    %v489 = vrot.slane %v466, 4
    %v490 = vadd.f32 %v466, %v489
    %v491 = vrot.slane %v490, 2
    %v492 = vadd.f32 %v490, %v491
    %v493 = vrot.slane %v492, 1
    %v494 = vadd.f32 %v492, %v493
    %v495 = vrot.slane %v467, 4
    %v496 = vadd.f32 %v467, %v495
    %v497 = vrot.slane %v496, 2
    %v498 = vadd.f32 %v496, %v497
    %v499 = vrot.slane %v498, 1
    %v500 = vadd.f32 %v498, %v499
    %v501 = vrot.slane %v468, 4
    %v502 = vadd.f32 %v468, %v501
    %v503 = vrot.slane %v502, 2
    %v504 = vadd.f32 %v502, %v503
    %v505 = vrot.slane %v504, 1
    %v506 = vadd.f32 %v504, %v505
    %v507 = vrot.slane %v469, 4
    %v508 = vadd.f32 %v469, %v507
    %v509 = vrot.slane %v508, 2
    %v510 = vadd.f32 %v508, %v509
    %v511 = vrot.slane %v510, 1
    %v512 = vadd.f32 %v510, %v511
    %v513 = vrot.slane %v470, 4
    %v514 = vadd.f32 %v470, %v513
    %v515 = vrot.slane %v514, 2
    %v516 = vadd.f32 %v514, %v515
    %v517 = vrot.slane %v516, 1
    %v518 = vadd.f32 %v516, %v517
    %v527 = vsel %vm158, %v482, %v476
    %v528 = vsel %vm160, %v488, %v527
    %v529 = vsel %vm162, %v494, %v528
    %v530 = vsel %vm164, %v500, %v529
    %v531 = vsel %vm166, %v506, %v530
    %v532 = vsel %vm168, %v512, %v531
    %v533 = vsel %vm170, %v518, %v532
    %535 = vst [vmem:[%s4] sm:$0xff] %v533
    // Predicated region
    $region22: #{attention_forward.1} parent=1 // pred_check
      _
    $region23: #{attention_forward.1} parent=1 // pred_check_branch
      %537 = sbr.rel (0) target = $region25
    $region24: #{attention_forward.1} parent=1 // pred_region
      _
    $region25: #{attention_forward.1} parent=1 // pred_fallthru
      _
    // Predicated region
    $region26: #{attention_forward.1} parent=1 // pred_check
      _
    $region27: #{attention_forward.1} parent=1 // pred_check_branch
      %539 = sbr.rel (0) target = $region29
    $region28: #{attention_forward.1} parent=1 // pred_region
      _
    $region29: #{attention_forward.1} parent=1 // pred_fallthru
      _
    // Predicated region
    $region30: #{attention_forward.1} parent=1 // pred_check
      _
    $region31: #{attention_forward.1} parent=1 // pred_check_branch
      %541 = sbr.rel (0) target = $region33
    $region32: #{attention_forward.1} parent=1 // pred_region
      _
    $region33: #{attention_forward.1} parent=1 // pred_fallthru
      _
    // Predicated region
    $region34: #{attention_forward.1} parent=1 // pred_check
      _
    $region35: #{attention_forward.1} parent=1 // pred_check_branch
      %543 = sbr.rel (0) target = $region37
    $region36: #{attention_forward.1} parent=1 // pred_region
      _
    $region37: #{attention_forward.1} parent=1 // pred_fallthru
      _
    %544 = vsyncpa [#allocation3], 1

</llo_original>
